<compile_context>
chip_gen: v6e
topology: v6e:2x2x1
jax: 0.10.0
libtpu: 0.0.40
codegen_flags: <defaults>
</compile_context>

<pallas_src>
import math

import jax
import jax.numpy as jnp
from jax.experimental import pallas as pl
from jax.experimental.pallas import tpu as pltpu


def _round_up(x, m):
    return (x + m - 1) // m * m


def _vmem_capacity_bytes():
    try:
        return int(pltpu.get_tpu_info().vmem_capacity_bytes)
    except Exception:
        return 64 << 20  # conservative: v7x per-TC VMEM


def _gcn_kernel(x_ref, adj_ref,
                w1_ref, b1_ref, w2_ref, b2_ref, w3_ref, b3_ref,
                out_ref):
    # One grid step == G graphs, flattened to (GN, .) with a block-diagonal
    # (GN, GN) adjacency so every matmul is a single full-width MXU pass.
    adj = adj_ref[0]                                 # (GN, GN) bf16
    h = x_ref[0]                                     # (GN, Fp_in) bf16

    def layer(h_bf16, w_ref, b_ref, relu):
        hw = jnp.dot(h_bf16, w_ref[...],
                     preferred_element_type=jnp.float32)        # f32 accum
        agg = jnp.dot(adj, hw.astype(jnp.bfloat16),
                      preferred_element_type=jnp.float32)       # f32 accum
        agg = agg + b_ref[...]                                  # (1, H) bcast
        if relu:
            agg = jnp.maximum(agg, 0.0)
        return agg

    h = layer(h, w1_ref, b1_ref, True)
    h = layer(h.astype(jnp.bfloat16), w2_ref, b2_ref, True)
    h = layer(h.astype(jnp.bfloat16), w3_ref, b3_ref, False)
    out_ref[0] = h.astype(out_ref.dtype)


def _choose_graphs_per_step(B, Np, fp_in, hp, fp_out, budget):
    target_rows = 256                      # ~full-depth MXU pass on v6e/v7x
    g = max(1, target_rows // Np)
    g = min(g, B)
    # Keep >= 2 grid steps (so both TCs on dual-core chips get work) ONLY if
    # that does not shrink the fused matmul below ~256 rows.
    half = B // 2
    if B >= 2 and half * Np >= target_rows:
        g = min(g, half)

    def step_bytes(gg):
        gn = gg * Np
        h_max = max(hp, fp_out)
        # double-buffered DMA blocks (x, block-diag adj, out), all bf16
        blocks = 2 * (gn * fp_in * 2 + gn * gn * 2 + gn * fp_out * 2)
        # f32 intermediates (hw + agg live simultaneously) + bf16 activation
        temps = 2 * gn * h_max * 4 + gn * max(fp_in, h_max) * 2
        # VMEM-resident weights + biases
        weights = (fp_in * hp + hp * hp + hp * fp_out) * 2 + 3 * h_max * 4
        return blocks + temps + weights

    while g > 1 and step_bytes(g) > budget:
        g -= 1
    return g


def gcn_forward(batch_graph, adj, params):
    """batch_graph: (B, N, F_in) f32; adj: (B, N, N) f32 -> (B, N, F_out) f32."""
    B, N, F_in = batch_graph.shape
    w1, b1, w2, b2, w3, b3 = params
    H = w1.shape[1]
    F_out = w3.shape[1]

    # Pad feature dims to lane width (128) and N to the bf16 sublane tile (16).
    Np = _round_up(N, 16)
    Fp_in = _round_up(F_in, 128)
    Hp = _round_up(H, 128)
    Fp_out = _round_up(F_out, 128)

    vmem_cap = _vmem_capacity_bytes()
    budget = int(vmem_cap * 0.6)           # headroom for Mosaic scratch etc.
    vmem_limit = int(vmem_cap * 0.75)

    G = _choose_graphs_per_step(B, Np, Fp_in, Hp, Fp_out, budget)
    Bp = _round_up(B, G)
    steps = Bp // G
    GN = G * Np

    # Zero padding is exact: padded graphs/nodes have all-zero adjacency rows
    # AND columns, so their relu(bias) rows never contaminate real rows, and
    # padded feature columns stay exactly zero through every layer.
    xg = jnp.zeros((Bp, Np, Fp_in), jnp.bfloat16)
    xg = xg.at[:B, :N, :F_in].set(batch_graph.astype(jnp.bfloat16))
    xg = xg.reshape(steps, GN, Fp_in)

    adj_p = jnp.zeros((Bp, Np, Np), jnp.bfloat16)
    adj_p = adj_p.at[:B, :N, :N].set(adj.astype(jnp.bfloat16))
    adj_grp = adj_p.reshape(steps, G, Np, Np)
    # Block-diagonal adjacency per step group (exact: multiply by 0/1 eye).
    eye = jnp.eye(G, dtype=jnp.bfloat16)
    adj_bd = jnp.einsum('sgij,gh->sgihj', adj_grp, eye).reshape(steps, GN, GN)

    def pad_w(w, r, c):
        return (jnp.zeros((r, c), jnp.bfloat16)
                .at[:w.shape[0], :w.shape[1]].set(w.astype(jnp.bfloat16)))

    def pad_b(b, c):
        return (jnp.zeros((1, c), jnp.float32)
                .at[0, :b.shape[0]].set(b.astype(jnp.float32)))

    w1p, b1p = pad_w(w1, Fp_in, Hp), pad_b(b1, Hp)
    w2p, b2p = pad_w(w2, Hp, Hp), pad_b(b2, Hp)
    w3p, b3p = pad_w(w3, Hp, Fp_out), pad_b(b3, Fp_out)

    # Constant operands: whole array resident in VMEM (no per-step pipelining).
    const = pl.BlockSpec(memory_space=pltpu.MemorySpace.VMEM)

    out = pl.pallas_call(
        _gcn_kernel,
        out_shape=jax.ShapeDtypeStruct((steps, GN, Fp_out), jnp.bfloat16),
        grid=(steps,),
        in_specs=[
            pl.BlockSpec((1, GN, Fp_in), lambda s: (s, 0, 0)),   # node features
            pl.BlockSpec((1, GN, GN),    lambda s: (s, 0, 0)),   # block-diag adj
            const, const,                                        # W1, b1
            const, const,                                        # W2, b2
            const, const,                                        # W3, b3
        ],
        out_specs=pl.BlockSpec((1, GN, Fp_out), lambda s: (s, 0, 0)),
        compiler_params=pltpu.CompilerParams(
            dimension_semantics=("parallel",),
            vmem_limit_bytes=vmem_limit),
    )(xg, adj_bd, w1p, b1p, w2p, b2p, w3p, b3p)

    out = out.reshape(Bp, Np, Fp_out)[:B, :N, :F_out]
    return out.astype(jnp.float32)


def _xavier_uniform(key, fan_in, fan_out):
    bound = math.sqrt(6.0 / (fan_in + fan_out))
    return jax.random.uniform(key, (fan_in, fan_out), jnp.float32,
                              minval=-bound, maxval=bound)


def init_gcn_params(key, input_dim, output_dim, hidden_dim):
    ks = jax.random.split(key, 6)
    w1 = _xavier_uniform(ks[0], input_dim, hidden_dim)
    w2 = _xavier_uniform(ks[1], hidden_dim, hidden_dim)
    w3 = _xavier_uniform(ks[2], hidden_dim, output_dim)
    b1 = jax.random.uniform(ks[3], (hidden_dim,), jnp.float32, -0.01, 0.01)
    b2 = jax.random.uniform(ks[4], (hidden_dim,), jnp.float32, -0.01, 0.01)
    b3 = jax.random.uniform(ks[5], (output_dim,), jnp.float32, -0.01, 0.01)
    return (w1, b1, w2, b2, w3, b3)


def gcn_reference(batch_graph, adj, params):
    """Pure-JAX f32 reference mirroring the PyTorch big_adj construction."""
    w1, b1, w2, b2, w3, b3 = params
    B, N, F_in = batch_graph.shape
    big_graph = batch_graph.reshape(B * N, F_in)
    big_adj = jnp.zeros((B * N, B * N), jnp.float32)
    for b in range(B):
        big_adj = big_adj.at[b * N:(b + 1) * N, b * N:(b + 1) * N].set(adj[b])
    x = jax.nn.relu(big_adj @ (big_graph @ w1) + b1)
    x = jax.nn.relu(big_adj @ (x @ w2) + b2)
    y = big_adj @ (x @ w3) + b3
    return y.reshape(B, N, -1)


if __name__ == "__main__":
    B, N = 8, 16
    input_dim, hidden_dim, output_dim = 12, 32, 10

    key = jax.random.PRNGKey(0)
    k_x, k_a, k_p = jax.random.split(key, 3)

    batch_graph = jax.random.normal(k_x, (B, N, input_dim), jnp.float32)
    # symmetric, self-looped, row-normalized adjacency (typical GCN input)
    raw = jax.random.uniform(k_a, (B, N, N), jnp.float32)
    adj = (raw + jnp.transpose(raw, (0, 2, 1))) * 0.5 + jnp.eye(N)[None]
    adj = adj / jnp.sum(adj, axis=-1, keepdims=True)

    params = init_gcn_params(k_p, input_dim, output_dim, hidden_dim)

    out = jax.block_until_ready(gcn_forward(batch_graph, adj, params))
    ref = gcn_reference(batch_graph, adj, params)

    assert out.shape == (B, N, output_dim)
    # bf16 matmuls / bf16 output (f32 accumulation) vs. pure-f32 reference.
    assert jnp.allclose(out, ref, atol=5e-2, rtol=5e-2), \
        float(jnp.max(jnp.abs(out - ref)))

    print("KERNEL_OK")
</pallas_src>

<mosaic_0001>
module attributes {stable_mosaic.version = 11 : i64} {
  func.func @_gcn_kernel(%arg0: i32, %arg1: memref<1x128x128xbf16, #tpu.memory_space<vmem>>, %arg2: memref<1x128x128xbf16, #tpu.memory_space<vmem>>, %arg3: memref<128x128xbf16, #tpu.memory_space<vmem>>, %arg4: memref<1x128xf32, #tpu.memory_space<vmem>>, %arg5: memref<128x128xbf16, #tpu.memory_space<vmem>>, %arg6: memref<1x128xf32, #tpu.memory_space<vmem>>, %arg7: memref<128x128xbf16, #tpu.memory_space<vmem>>, %arg8: memref<1x128xf32, #tpu.memory_space<vmem>>, %arg9: memref<1x128x128xbf16, #tpu.memory_space<vmem>>) attributes {dimension_semantics = [#tpu.dimension_semantics<parallel>], iteration_bounds = array<i64: 1>, scalar_prefetch = 0 : i64, scratch_operands = 0 : i64, tpu.core_type = #tpu.core_type<tc>, window_params = [{transform_indices = @transform_0, window_bounds = array<i64: 1, 128, 128>}, {transform_indices = @transform_1, window_bounds = array<i64: 1, 128, 128>}, {pipeline_mode = #tpu.pipeline_mode<synchronous>, transform_indices = @transform_2, window_bounds = array<i64: 128, 128>}, {pipeline_mode = #tpu.pipeline_mode<synchronous>, transform_indices = @transform_3, window_bounds = array<i64: 1, 128>}, {pipeline_mode = #tpu.pipeline_mode<synchronous>, transform_indices = @transform_4, window_bounds = array<i64: 128, 128>}, {pipeline_mode = #tpu.pipeline_mode<synchronous>, transform_indices = @transform_5, window_bounds = array<i64: 1, 128>}, {pipeline_mode = #tpu.pipeline_mode<synchronous>, transform_indices = @transform_6, window_bounds = array<i64: 128, 128>}, {pipeline_mode = #tpu.pipeline_mode<synchronous>, transform_indices = @transform_7, window_bounds = array<i64: 1, 128>}, {transform_indices = @transform_8, window_bounds = array<i64: 1, 128, 128>}]} {
    %c0 = arith.constant 0 : index
    %c0_0 = arith.constant 0 : index
    %c0_1 = arith.constant 0 : index
    %0 = vector.load %arg2[%c0, %c0_0, %c0_1] : memref<1x128x128xbf16, #tpu.memory_space<vmem>>, vector<1x128x128xbf16>
    %1 = vector.shape_cast %0 : vector<1x128x128xbf16> to vector<128x128xbf16>
    %c0_2 = arith.constant 0 : index
    %c0_3 = arith.constant 0 : index
    %c0_4 = arith.constant 0 : index
    %2 = vector.load %arg1[%c0_2, %c0_3, %c0_4] : memref<1x128x128xbf16, #tpu.memory_space<vmem>>, vector<1x128x128xbf16>
    %3 = vector.shape_cast %2 : vector<1x128x128xbf16> to vector<128x128xbf16>
    %c0_5 = arith.constant 0 : index
    %c0_6 = arith.constant 0 : index
    %4 = vector.load %arg3[%c0_5, %c0_6] : memref<128x128xbf16, #tpu.memory_space<vmem>>, vector<128x128xbf16>
    %cst = arith.constant dense<0.000000e+00> : vector<128x128xf32>
    %5 = tpu.matmul %3, %4, %cst {dimension_numbers = #tpu.dot_dimension_numbers<[1], [0], [0], [1], [0, 0, 1, 1], [], []>} : vector<128x128xbf16>, vector<128x128xbf16>, vector<128x128xf32> -> vector<128x128xf32>
    %6 = arith.truncf %5 : vector<128x128xf32> to vector<128x128xbf16>
    %cst_7 = arith.constant dense<0.000000e+00> : vector<128x128xf32>
    %7 = tpu.matmul %1, %6, %cst_7 {dimension_numbers = #tpu.dot_dimension_numbers<[1], [0], [0], [1], [0, 0, 1, 1], [], []>} : vector<128x128xbf16>, vector<128x128xbf16>, vector<128x128xf32> -> vector<128x128xf32>
    %c0_8 = arith.constant 0 : index
    %c0_9 = arith.constant 0 : index
    %8 = vector.load %arg4[%c0_8, %c0_9] : memref<1x128xf32, #tpu.memory_space<vmem>>, vector<1x128xf32>
    %9 = vector.broadcast %8 : vector<1x128xf32> to vector<128x128xf32>
    %10 = arith.addf %7, %9 : vector<128x128xf32>
    %cst_10 = arith.constant 0.000000e+00 : f32
    %11 = vector.broadcast %cst_10 : f32 to vector<128x128xf32>
    %12 = arith.maximumf %10, %11 : vector<128x128xf32>
    %13 = arith.truncf %12 : vector<128x128xf32> to vector<128x128xbf16>
    %c0_11 = arith.constant 0 : index
    %c0_12 = arith.constant 0 : index
    %14 = vector.load %arg5[%c0_11, %c0_12] : memref<128x128xbf16, #tpu.memory_space<vmem>>, vector<128x128xbf16>
    %cst_13 = arith.constant dense<0.000000e+00> : vector<128x128xf32>
    %15 = tpu.matmul %13, %14, %cst_13 {dimension_numbers = #tpu.dot_dimension_numbers<[1], [0], [0], [1], [0, 0, 1, 1], [], []>} : vector<128x128xbf16>, vector<128x128xbf16>, vector<128x128xf32> -> vector<128x128xf32>
    %16 = arith.truncf %15 : vector<128x128xf32> to vector<128x128xbf16>
    %cst_14 = arith.constant dense<0.000000e+00> : vector<128x128xf32>
    %17 = tpu.matmul %1, %16, %cst_14 {dimension_numbers = #tpu.dot_dimension_numbers<[1], [0], [0], [1], [0, 0, 1, 1], [], []>} : vector<128x128xbf16>, vector<128x128xbf16>, vector<128x128xf32> -> vector<128x128xf32>
    %c0_15 = arith.constant 0 : index
    %c0_16 = arith.constant 0 : index
    %18 = vector.load %arg6[%c0_15, %c0_16] : memref<1x128xf32, #tpu.memory_space<vmem>>, vector<1x128xf32>
    %19 = vector.broadcast %18 : vector<1x128xf32> to vector<128x128xf32>
    %20 = arith.addf %17, %19 : vector<128x128xf32>
    %cst_17 = arith.constant 0.000000e+00 : f32
    %21 = vector.broadcast %cst_17 : f32 to vector<128x128xf32>
    %22 = arith.maximumf %20, %21 : vector<128x128xf32>
    %23 = arith.truncf %22 : vector<128x128xf32> to vector<128x128xbf16>
    %c0_18 = arith.constant 0 : index
    %c0_19 = arith.constant 0 : index
    %24 = vector.load %arg7[%c0_18, %c0_19] : memref<128x128xbf16, #tpu.memory_space<vmem>>, vector<128x128xbf16>
    %cst_20 = arith.constant dense<0.000000e+00> : vector<128x128xf32>
    %25 = tpu.matmul %23, %24, %cst_20 {dimension_numbers = #tpu.dot_dimension_numbers<[1], [0], [0], [1], [0, 0, 1, 1], [], []>} : vector<128x128xbf16>, vector<128x128xbf16>, vector<128x128xf32> -> vector<128x128xf32>
    %26 = arith.truncf %25 : vector<128x128xf32> to vector<128x128xbf16>
    %cst_21 = arith.constant dense<0.000000e+00> : vector<128x128xf32>
    %27 = tpu.matmul %1, %26, %cst_21 {dimension_numbers = #tpu.dot_dimension_numbers<[1], [0], [0], [1], [0, 0, 1, 1], [], []>} : vector<128x128xbf16>, vector<128x128xbf16>, vector<128x128xf32> -> vector<128x128xf32>
    %c0_22 = arith.constant 0 : index
    %c0_23 = arith.constant 0 : index
    %28 = vector.load %arg8[%c0_22, %c0_23] : memref<1x128xf32, #tpu.memory_space<vmem>>, vector<1x128xf32>
    %29 = vector.broadcast %28 : vector<1x128xf32> to vector<128x128xf32>
    %30 = arith.addf %27, %29 : vector<128x128xf32>
    %31 = arith.truncf %30 : vector<128x128xf32> to vector<128x128xbf16>
    %c0_24 = arith.constant 0 : index
    %c0_25 = arith.constant 0 : index
    %c0_26 = arith.constant 0 : index
    %32 = vector.load %arg9[%c0_24, %c0_25, %c0_26] : memref<1x128x128xbf16, #tpu.memory_space<vmem>>, vector<1x128x128xbf16>
    %33 = vector.shape_cast %32 : vector<1x128x128xbf16> to vector<128x128xbf16>
    %34 = vector.shape_cast %31 : vector<128x128xbf16> to vector<1x128x128xbf16>
    tpu.vector_store %arg9[%c0_24, %c0_25, %c0_26], %34 {strides = array<i32>} : memref<1x128x128xbf16, #tpu.memory_space<vmem>>, vector<1x128x128xbf16>,
    return
  }
  func.func @transform_0(%arg0: i32) -> (i32, i32, i32) {
    %c0_i32 = arith.constant 0 : i32
    %c0_i32_0 = arith.constant 0 : i32
    %c0_i32_1 = arith.constant 0 : i32
    return %arg0, %c0_i32, %c0_i32_0 : i32, i32, i32
  }
  func.func @transform_1(%arg0: i32) -> (i32, i32, i32) {
    %c0_i32 = arith.constant 0 : i32
    %c0_i32_0 = arith.constant 0 : i32
    %c0_i32_1 = arith.constant 0 : i32
    return %arg0, %c0_i32, %c0_i32_0 : i32, i32, i32
  }
  func.func @transform_2(%arg0: i32) -> (i32, i32) {
    %c0_i32 = arith.constant 0 : i32
    %c0_i32_0 = arith.constant 0 : i32
    %c0_i32_1 = arith.constant 0 : i32
    return %c0_i32, %c0_i32_0 : i32, i32
  }
  func.func @transform_3(%arg0: i32) -> (i32, i32) {
    %c0_i32 = arith.constant 0 : i32
    %c0_i32_0 = arith.constant 0 : i32
    %c0_i32_1 = arith.constant 0 : i32
    return %c0_i32, %c0_i32_0 : i32, i32
  }
  func.func @transform_4(%arg0: i32) -> (i32, i32) {
    %c0_i32 = arith.constant 0 : i32
    %c0_i32_0 = arith.constant 0 : i32
    %c0_i32_1 = arith.constant 0 : i32
    return %c0_i32, %c0_i32_0 : i32, i32
  }
  func.func @transform_5(%arg0: i32) -> (i32, i32) {
    %c0_i32 = arith.constant 0 : i32
    %c0_i32_0 = arith.constant 0 : i32
    %c0_i32_1 = arith.constant 0 : i32
    return %c0_i32, %c0_i32_0 : i32, i32
  }
  func.func @transform_6(%arg0: i32) -> (i32, i32) {
    %c0_i32 = arith.constant 0 : i32
    %c0_i32_0 = arith.constant 0 : i32
    %c0_i32_1 = arith.constant 0 : i32
    return %c0_i32, %c0_i32_0 : i32, i32
  }
  func.func @transform_7(%arg0: i32) -> (i32, i32) {
    %c0_i32 = arith.constant 0 : i32
    %c0_i32_0 = arith.constant 0 : i32
    %c0_i32_1 = arith.constant 0 : i32
    return %c0_i32, %c0_i32_0 : i32, i32
  }
  func.func @transform_8(%arg0: i32) -> (i32, i32, i32) {
    %c0_i32 = arith.constant 0 : i32
    %c0_i32_0 = arith.constant 0 : i32
    %c0_i32_1 = arith.constant 0 : i32
    return %arg0, %c0_i32, %c0_i32_0 : i32, i32, i32
  }
}

</mosaic_0001>

<llo_original>
// kernel: tpu_custom_call.1
$region0: #{tpu_custom_call.1}
  #allocation0 [shape = 'u32[]', space=smem, size = 0x4, offset = 0x4, fixed_abs, tag = 'smem constant byte address 0x4 - core index']
  #allocation1 [shape = 'u32[144,128]{1,0:T(1,128)}', space=vmem, size = 0x12000, scoped, tag = 'internal scratch']
  %s0 = inlined_call_operand.hbm [shape: bf16[1,128,128], index: 0, kind: input, shape index: {}]
  %s1 = inlined_call_operand.hbm [shape: bf16[1,128,128], index: 1, kind: input, shape index: {}]
  %s2 = inlined_call_operand.hbm [shape: bf16[128,128], index: 2, kind: input, shape index: {}]
  %s3 = inlined_call_operand.vmem [shape: f32[1,128], index: 3, kind: input, shape index: {}]
  %s4 = inlined_call_operand.hbm [shape: bf16[128,128], index: 4, kind: input, shape index: {}]
  %s5 = inlined_call_operand.vmem [shape: f32[1,128], index: 5, kind: input, shape index: {}]
  %s6 = inlined_call_operand.hbm [shape: bf16[128,128], index: 6, kind: input, shape index: {}]
  %s7 = inlined_call_operand.vmem [shape: f32[1,128], index: 7, kind: input, shape index: {}]
  %s8 = inlined_call_operand.hbm [shape: bf16[1,128,128], index: 8, kind: output, shape index: {}]
  %s9 = sld [smem:[#allocation0]]
  $region62: #{tpu_custom_call.1} parent=0
    _
  %s11 = ssub.s32 1, %s9
  %s12 = scalar_select 0, %s11, %s9
  $region1: #{tpu_custom_call.1} parent=0
    #allocation2 [shape = 'u8[32768]{0}', space=vmem, size = 0x8000, scoped, tag = 'input window, operand 0, single buffered']
    #allocation3 [shape = 's32[1]{0}', space=sflag, size = 0x4, scoped, tag = 'scoped memory for tpu_custom_call.1']
    #allocation4 [shape = 's32[1]{0}', space=sflag, size = 0x4, scoped, tag = 'scoped memory for tpu_custom_call.1']
    #allocation5 [shape = 'u8[32768]{0}', space=vmem, size = 0x8000, scoped, tag = 'input window, operand 1, single buffered']
    #allocation6 [shape = 's32[1]{0}', space=sflag, size = 0x4, scoped, tag = 'scoped memory for tpu_custom_call.1']
    #allocation7 [shape = 'u8[32768]{0}', space=vmem, size = 0x8000, scoped, tag = 'input window, operand 2, single buffered']
    #allocation8 [shape = 'u8[32768]{0}', space=vmem, size = 0x8000, scoped, tag = 'input window, operand 4, single buffered']
    #allocation9 [shape = 's32[1]{0}', space=sflag, size = 0x4, scoped, tag = 'scoped memory for tpu_custom_call.1']
    #allocation10 [shape = 'u8[32768]{0}', space=vmem, size = 0x8000, scoped, tag = 'input window, operand 6, single buffered']
    #allocation11 [shape = 'u8[32768]{0}', space=vmem, size = 0x8000, scoped, tag = 'output window, operand 0, single buffered']
    %13 = vsyncpa [#allocation3], 0
    %14 = vsyncpa [#allocation6], 0
    %15 = vsyncpa [#allocation9], 0
    %16 = vsyncpa [#allocation4], 0
    // Predicated region
    $region2: #{tpu_custom_call.1} parent=1 // pred_check
      _
    $region3: #{tpu_custom_call.1} parent=1 // pred_check_branch
      %18 = sbr.rel (0) target = $region5
    $region4: #{tpu_custom_call.1} parent=1 // pred_region
      %s20 = ssub.s32 1024, 1024
      %21 = vsyncadd [#allocation3], %s20
      %s22 = sshll.u32 [#allocation2], 4
      %s23 = int_to_ptr.vmem [resolvable:$true] %s22
      %28 = dma.hbm_to_vmem [thread:$0]  %s0, 1024, %s23, [#allocation3], 64, 64, 4
    $region5: #{tpu_custom_call.1} parent=1 // pred_fallthru
      _
    // Predicated region
    $region6: #{tpu_custom_call.1} parent=1 // pred_check
      _
    $region7: #{tpu_custom_call.1} parent=1 // pred_check_branch
      %30 = sbr.rel (0) target = $region9
    $region8: #{tpu_custom_call.1} parent=1 // pred_region
      %s32 = ssub.s32 1024, 1024
      %33 = vsyncadd [#allocation6], %s32
      %s34 = sshll.u32 [#allocation5], 4
      %s35 = int_to_ptr.vmem [resolvable:$true] %s34
      %40 = dma.hbm_to_vmem [thread:$0]  %s1, 1024, %s35, [#allocation6], 64, 64, 4
    $region9: #{tpu_custom_call.1} parent=1 // pred_fallthru
      _
    // Predicated region
    $region10: #{tpu_custom_call.1} parent=1 // pred_check
      _
    $region11: #{tpu_custom_call.1} parent=1 // pred_check_branch
      %42 = sbr.rel (0) target = $region13
    $region12: #{tpu_custom_call.1} parent=1 // pred_region
      %s44 = ssub.s32 1024, 1024
      %45 = vsyncadd [#allocation6], %s44
      %s46 = sshll.u32 [#allocation7], 4
      %s47 = int_to_ptr.vmem [resolvable:$true] %s46
      %52 = dma.hbm_to_vmem [thread:$0]  %s2, 1024, %s47, [#allocation6], 64, 64, 4
    $region13: #{tpu_custom_call.1} parent=1 // pred_fallthru
      _
    // Predicated region
    $region14: #{tpu_custom_call.1} parent=1 // pred_check
      _
    $region15: #{tpu_custom_call.1} parent=1 // pred_check_branch
      %54 = sbr.rel (0) target = $region17
    $region16: #{tpu_custom_call.1} parent=1 // pred_region
      _
    $region17: #{tpu_custom_call.1} parent=1 // pred_fallthru
      _
    // Predicated region
    $region18: #{tpu_custom_call.1} parent=1 // pred_check
      _
    $region19: #{tpu_custom_call.1} parent=1 // pred_check_branch
      %56 = sbr.rel (0) target = $region21
    $region20: #{tpu_custom_call.1} parent=1 // pred_region
      %s58 = ssub.s32 1024, 1024
      %59 = vsyncadd [#allocation9], %s58
      %s60 = sshll.u32 [#allocation8], 4
      %s61 = int_to_ptr.vmem [resolvable:$true] %s60
      %66 = dma.hbm_to_vmem [thread:$0]  %s4, 1024, %s61, [#allocation9], 64, 64, 4
    $region21: #{tpu_custom_call.1} parent=1 // pred_fallthru
      _
    // Predicated region
    $region22: #{tpu_custom_call.1} parent=1 // pred_check
      _
    $region23: #{tpu_custom_call.1} parent=1 // pred_check_branch
      %68 = sbr.rel (0) target = $region25
    $region24: #{tpu_custom_call.1} parent=1 // pred_region
      _
    $region25: #{tpu_custom_call.1} parent=1 // pred_fallthru
      _
    // Predicated region
    $region26: #{tpu_custom_call.1} parent=1 // pred_check
      _
    $region27: #{tpu_custom_call.1} parent=1 // pred_check_branch
      %70 = sbr.rel (0) target = $region29
    $region28: #{tpu_custom_call.1} parent=1 // pred_region
      %s72 = ssub.s32 1024, 1024
      %73 = vsyncadd [#allocation9], %s72
      %s74 = sshll.u32 [#allocation10], 4
      %s75 = int_to_ptr.vmem [resolvable:$true] %s74
      %80 = dma.hbm_to_vmem [thread:$0]  %s6, 1024, %s75, [#allocation9], 64, 64, 4
    $region29: #{tpu_custom_call.1} parent=1 // pred_fallthru
      _
    // Predicated region
    $region30: #{tpu_custom_call.1} parent=1 // pred_check
      _
    $region31: #{tpu_custom_call.1} parent=1 // pred_check_branch
      %82 = sbr.rel (0) target = $region33
    $region32: #{tpu_custom_call.1} parent=1 // pred_region
      _
    $region33: #{tpu_custom_call.1} parent=1 // pred_fallthru
      _
    // Predicated region
    $region34: #{tpu_custom_call.1} parent=1 // pred_check
      _
    $region35: #{tpu_custom_call.1} parent=1 // pred_check_branch
      %84 = sbr.rel (0) target = $region37
    $region36: #{tpu_custom_call.1} parent=1 // pred_region
      %85 = dma.done [#allocation3], 1024
    $region37: #{tpu_custom_call.1} parent=1 // pred_fallthru
      _
    // Predicated region
    $region38: #{tpu_custom_call.1} parent=1 // pred_check
      _
    $region39: #{tpu_custom_call.1} parent=1 // pred_check_branch
      %87 = sbr.rel (0) target = $region41
    $region40: #{tpu_custom_call.1} parent=1 // pred_region
      %88 = dma.done [#allocation6], 1024
    $region41: #{tpu_custom_call.1} parent=1 // pred_fallthru
      _
    // Predicated region
    $region42: #{tpu_custom_call.1} parent=1 // pred_check
      _
    $region43: #{tpu_custom_call.1} parent=1 // pred_check_branch
      %90 = sbr.rel (0) target = $region45
    $region44: #{tpu_custom_call.1} parent=1 // pred_region
      %91 = dma.done [#allocation6], 1024
    $region45: #{tpu_custom_call.1} parent=1 // pred_fallthru
      _
    // Predicated region
    $region46: #{tpu_custom_call.1} parent=1 // pred_check
      _
    $region47: #{tpu_custom_call.1} parent=1 // pred_check_branch
      %93 = sbr.rel (0) target = $region49
    $region48: #{tpu_custom_call.1} parent=1 // pred_region
      %94 = dma.done [#allocation9], 1024
    $region49: #{tpu_custom_call.1} parent=1 // pred_fallthru
      _
    // Predicated region
    $region50: #{tpu_custom_call.1} parent=1 // pred_check
      _
    $region51: #{tpu_custom_call.1} parent=1 // pred_check_branch
      %96 = sbr.rel (0) target = $region53
    $region52: #{tpu_custom_call.1} parent=1 // pred_region
      %97 = dma.done [#allocation9], 1024
    $region53: #{tpu_custom_call.1} parent=1 // pred_fallthru
      _
    %v99 = vld [vmem:[#allocation5] sm:$0xf]
    %v100 = vld [vmem:[#allocation5 + $0x4] sm:$0xf]
    %v101 = vld [vmem:[#allocation5 + $0x8] sm:$0xf]
    %v102 = vld [vmem:[#allocation5 + $0xc] sm:$0xf]
    %v103 = vld [vmem:[#allocation5 + $0x10] sm:$0xf]
    %v104 = vld [vmem:[#allocation5 + $0x14] sm:$0xf]
    %v105 = vld [vmem:[#allocation5 + $0x18] sm:$0xf]
    %v106 = vld [vmem:[#allocation5 + $0x1c] sm:$0xf]
    %v107 = vld [vmem:[#allocation5 + $0x20] sm:$0xf]
    %v108 = vld [vmem:[#allocation5 + $0x24] sm:$0xf]
    %v109 = vld [vmem:[#allocation5 + $0x28] sm:$0xf]
    %v110 = vld [vmem:[#allocation5 + $0x2c] sm:$0xf]
    %v111 = vld [vmem:[#allocation5 + $0x30] sm:$0xf]
    %v112 = vld [vmem:[#allocation5 + $0x34] sm:$0xf]
    %v113 = vld [vmem:[#allocation5 + $0x38] sm:$0xf]
    %v114 = vld [vmem:[#allocation5 + $0x3c] sm:$0xf]
    %v115 = vld [vmem:[#allocation2] sm:$0xf]
    %v116 = vld [vmem:[#allocation2 + $0x4] sm:$0xf]
    %v117 = vld [vmem:[#allocation2 + $0x8] sm:$0xf]
    %v118 = vld [vmem:[#allocation2 + $0xc] sm:$0xf]
    %v119 = vld [vmem:[#allocation2 + $0x10] sm:$0xf]
    %v120 = vld [vmem:[#allocation2 + $0x14] sm:$0xf]
    %v121 = vld [vmem:[#allocation2 + $0x18] sm:$0xf]
    %v122 = vld [vmem:[#allocation2 + $0x1c] sm:$0xf]
    %v123 = vld [vmem:[#allocation2 + $0x20] sm:$0xf]
    %v124 = vld [vmem:[#allocation2 + $0x24] sm:$0xf]
    %v125 = vld [vmem:[#allocation2 + $0x28] sm:$0xf]
    %v126 = vld [vmem:[#allocation2 + $0x2c] sm:$0xf]
    %v127 = vld [vmem:[#allocation2 + $0x30] sm:$0xf]
    %v128 = vld [vmem:[#allocation2 + $0x34] sm:$0xf]
    %v129 = vld [vmem:[#allocation2 + $0x38] sm:$0xf]
    %v130 = vld [vmem:[#allocation2 + $0x3c] sm:$0xf]
    %v131 = vld [vmem:[#allocation7] sm:$0xf]
    %v132 = vld [vmem:[#allocation7 + $0x4] sm:$0xf]
    %v133 = vld [vmem:[#allocation7 + $0x8] sm:$0xf]
    %v134 = vld [vmem:[#allocation7 + $0xc] sm:$0xf]
    %v135 = vld [vmem:[#allocation7 + $0x10] sm:$0xf]
    %v136 = vld [vmem:[#allocation7 + $0x14] sm:$0xf]
    %v137 = vld [vmem:[#allocation7 + $0x18] sm:$0xf]
    %v138 = vld [vmem:[#allocation7 + $0x1c] sm:$0xf]
    %v139 = vld [vmem:[#allocation7 + $0x20] sm:$0xf]
    %v140 = vld [vmem:[#allocation7 + $0x24] sm:$0xf]
    %v141 = vld [vmem:[#allocation7 + $0x28] sm:$0xf]
    %v142 = vld [vmem:[#allocation7 + $0x2c] sm:$0xf]
    %v143 = vld [vmem:[#allocation7 + $0x30] sm:$0xf]
    %v144 = vld [vmem:[#allocation7 + $0x34] sm:$0xf]
    %v145 = vld [vmem:[#allocation7 + $0x38] sm:$0xf]
    %v146 = vld [vmem:[#allocation7 + $0x3c] sm:$0xf]
    %v163 = vunpack.c.l.b16 %v115
    %v164 = vunpack.c.l.b16 %v116
    %v165 = vunpack.c.l.b16 %v117
    %v166 = vunpack.c.l.b16 %v118
    %v167 = vunpack.c.l.b16 %v119
    %v168 = vunpack.c.l.b16 %v120
    %v169 = vunpack.c.l.b16 %v121
    %v170 = vunpack.c.l.b16 %v122
    %v171 = vunpack.c.l.b16 %v123
    %v172 = vunpack.c.l.b16 %v124
    %v173 = vunpack.c.l.b16 %v125
    %v174 = vunpack.c.l.b16 %v126
    %v175 = vunpack.c.l.b16 %v127
    %v176 = vunpack.c.l.b16 %v128
    %v177 = vunpack.c.l.b16 %v129
    %v178 = vunpack.c.l.b16 %v130
    %v179 = vpack.c.b16 %v164, %v163
    %v180 = vpack.c.b16 %v166, %v165
    %v181 = vpack.c.b16 %v168, %v167
    %v182 = vpack.c.b16 %v170, %v169
    %v183 = vpack.c.b16 %v172, %v171
    %v184 = vpack.c.b16 %v174, %v173
    %v185 = vpack.c.b16 %v176, %v175
    %v186 = vpack.c.b16 %v178, %v177
    %v211 = vunpack.c.l.b16 %v131
    %v212 = vunpack.c.l.b16 %v132
    %v213 = vunpack.c.l.b16 %v133
    %v214 = vunpack.c.l.b16 %v134
    %v215 = vunpack.c.l.b16 %v135
    %v216 = vunpack.c.l.b16 %v136
    %v217 = vunpack.c.l.b16 %v137
    %v218 = vunpack.c.l.b16 %v138
    %v219 = vunpack.c.l.b16 %v139
    %v220 = vunpack.c.l.b16 %v140
    %v221 = vunpack.c.l.b16 %v141
    %v222 = vunpack.c.l.b16 %v142
    %v223 = vunpack.c.l.b16 %v143
    %v224 = vunpack.c.l.b16 %v144
    %v225 = vunpack.c.l.b16 %v145
    %v226 = vunpack.c.l.b16 %v146
    %v227 = vpack.c.b16 %v212, %v211
    %v228 = vpack.c.b16 %v214, %v213
    %v229 = vpack.c.b16 %v216, %v215
    %v230 = vpack.c.b16 %v218, %v217
    %v231 = vpack.c.b16 %v220, %v219
    %v232 = vpack.c.b16 %v222, %v221
    %v233 = vpack.c.b16 %v224, %v223
    %v234 = vpack.c.b16 %v226, %v225
    %243 = vmatprep.subr.bf16.mxu0 0
    %244 = vmatpush1.bf16.msra.mxu0 %v234
    %245 = vmatprep.subr.bf16.mxu0 0
    %246 = vmatpush1.bf16.msra.mxu0 %v233
    %247 = vmatprep.subr.bf16.mxu0 0
    %248 = vmatpush1.bf16.msra.mxu0 %v232
    %249 = vmatprep.subr.bf16.mxu0 0
    %250 = vmatpush1.bf16.msra.mxu0 %v231
    %251 = vmatprep.subr.bf16.mxu0 0
    %252 = vmatpush1.bf16.msra.mxu0 %v230
    %253 = vmatprep.subr.bf16.mxu0 0
    %254 = vmatpush1.bf16.msra.mxu0 %v229
    %255 = vmatprep.subr.bf16.mxu0 0
    %256 = vmatpush1.bf16.msra.mxu0 %v228
    %257 = vmatprep.subr.bf16.mxu0 0
    %258 = vmatpush1.bf16.msra.mxu0 %v227
    %259 = vmatprep.subr.bf16.mxu0 0
    %260 = vmatpush2.bf16.msra.mxu0 0
    %261 = vmatprep.subr.bf16.mxu0 0
    %262 = vmatpush2.bf16.msra.mxu0 0
    %263 = vmatprep.subr.bf16.mxu0 0
    %264 = vmatpush2.bf16.msra.mxu0 0
    %265 = vmatprep.subr.bf16.mxu0 0
    %266 = vmatpush2.bf16.msra.mxu0 0
    %267 = vmatprep.subr.bf16.mxu0 0
    %268 = vmatpush2.bf16.msra.mxu0 0
    %269 = vmatprep.subr.bf16.mxu0 0
    %270 = vmatpush2.bf16.msra.mxu0 0
    %271 = vmatprep.subr.bf16.mxu0 0
    %272 = vmatpush2.bf16.msra.mxu0 0
    %273 = vmatprep.subr.bf16.mxu0 0
    %274 = vmatpush2.bf16.msra.mxu0 0
    %275 = vmatprep.mubr.bf16.mxu0 0
    %276 = vmatmul.mubr.bf16.gmra.mxu0 %v179
    %v277 = vpop.f32.mrf.mxu0
    %v278 = vadd.f32 0.0, %v277
    %v279 = vpop.f32.mrf.mxu0
    %v280 = vpop.f32.mrf.mxu0
    %v281 = vadd.f32 0.0, %v280
    %v282 = vpop.f32.mrf.mxu0
    %283 = vmatprep.mubr.bf16.mxu0 0
    %284 = vmatmul.mubr.bf16.gmra.mxu0 %v180
    %v285 = vpop.f32.mrf.mxu0
    %v286 = vadd.f32 0.0, %v285
    %v287 = vpop.f32.mrf.mxu0
    %v288 = vpop.f32.mrf.mxu0
    %v289 = vadd.f32 0.0, %v288
    %v290 = vpop.f32.mrf.mxu0
    %291 = vmatprep.mubr.bf16.mxu0 0
    %292 = vmatmul.mubr.bf16.gmra.mxu0 %v181
    %v293 = vpop.f32.mrf.mxu0
    %v294 = vadd.f32 0.0, %v293
    %v295 = vpop.f32.mrf.mxu0
    %v296 = vpop.f32.mrf.mxu0
    %v297 = vadd.f32 0.0, %v296
    %v298 = vpop.f32.mrf.mxu0
    %299 = vmatprep.mubr.bf16.mxu0 0
    %300 = vmatmul.mubr.bf16.gmra.mxu0 %v182
    %v301 = vpop.f32.mrf.mxu0
    %v302 = vadd.f32 0.0, %v301
    %v303 = vpop.f32.mrf.mxu0
    %v304 = vpop.f32.mrf.mxu0
    %v305 = vadd.f32 0.0, %v304
    %v306 = vpop.f32.mrf.mxu0
    %307 = vmatprep.mubr.bf16.mxu0 0
    %308 = vmatmul.mubr.bf16.gmra.mxu0 %v183
    %v309 = vpop.f32.mrf.mxu0
    %v310 = vadd.f32 0.0, %v309
    %v311 = vpop.f32.mrf.mxu0
    %v312 = vpop.f32.mrf.mxu0
    %v313 = vadd.f32 0.0, %v312
    %v314 = vpop.f32.mrf.mxu0
    %315 = vmatprep.mubr.bf16.mxu0 0
    %316 = vmatmul.mubr.bf16.gmra.mxu0 %v184
    %v317 = vpop.f32.mrf.mxu0
    %v318 = vadd.f32 0.0, %v317
    %v319 = vpop.f32.mrf.mxu0
    %v320 = vpop.f32.mrf.mxu0
    %v321 = vadd.f32 0.0, %v320
    %v322 = vpop.f32.mrf.mxu0
    %323 = vmatprep.mubr.bf16.mxu0 0
    %324 = vmatmul.mubr.bf16.gmra.mxu0 %v185
    %v325 = vpop.f32.mrf.mxu0
    %v326 = vadd.f32 0.0, %v325
    %v327 = vpop.f32.mrf.mxu0
    %v328 = vpop.f32.mrf.mxu0
    %v329 = vadd.f32 0.0, %v328
    %v330 = vpop.f32.mrf.mxu0
    %331 = vmatprep.mubr.bf16.mxu0 0
    %332 = vmatmul.mubr.bf16.gmra.mxu0 %v186
    %v333 = vpop.f32.mrf.mxu0
    %v334 = vadd.f32 0.0, %v333
    %v335 = vpop.f32.mrf.mxu0
    %v336 = vpop.f32.mrf.mxu0
    %v337 = vadd.f32 0.0, %v336
    %v338 = vpop.f32.mrf.mxu0
    %339 = vdwg.mxu0
    %v340 = vpack.c.bf16 %v281, %v278
    %v341 = vpack.c.bf16 %v289, %v286
    %v342 = vpack.c.bf16 %v297, %v294
    %v343 = vpack.c.bf16 %v305, %v302
    %v344 = vpack.c.bf16 %v313, %v310
    %v345 = vpack.c.bf16 %v321, %v318
    %v346 = vpack.c.bf16 %v329, %v326
    %v347 = vpack.c.bf16 %v337, %v334
    %v348 = vld [vmem:[%s3] sm:$0x1]
    %v350 = vlaneseq
    %v351 = vshrl.u32 %v350, 7
    %v352 = vsub.s32 0, %v351
    %v353 = vrot.slane %v348, %v352
    %v371 = vunpack.c.l.b16 %v99
    %v372 = vunpack.c.l.b16 %v100
    %v373 = vunpack.c.l.b16 %v101
    %v374 = vunpack.c.l.b16 %v102
    %v375 = vunpack.c.l.b16 %v103
    %v376 = vunpack.c.l.b16 %v104
    %v377 = vunpack.c.l.b16 %v105
    %v378 = vunpack.c.l.b16 %v106
    %v379 = vunpack.c.l.b16 %v107
    %v380 = vunpack.c.l.b16 %v108
    %v381 = vunpack.c.l.b16 %v109
    %v382 = vunpack.c.l.b16 %v110
    %v383 = vunpack.c.l.b16 %v111
    %v384 = vunpack.c.l.b16 %v112
    %v385 = vunpack.c.l.b16 %v113
    %v386 = vunpack.c.l.b16 %v114
    %v387 = vpack.c.b16 %v372, %v371
    %v388 = vpack.c.b16 %v374, %v373
    %v389 = vpack.c.b16 %v376, %v375
    %v390 = vpack.c.b16 %v378, %v377
    %v391 = vpack.c.b16 %v380, %v379
    %v392 = vpack.c.b16 %v382, %v381
    %v393 = vpack.c.b16 %v384, %v383
    %v394 = vpack.c.b16 %v386, %v385
    %403 = vmatprep.subr.bf16.mxu0 0
    %404 = vmatpush1.bf16.msra.mxu0 %v347
    %405 = vmatprep.subr.bf16.mxu0 0
    %406 = vmatpush1.bf16.msra.mxu0 %v346
    %407 = vmatprep.subr.bf16.mxu0 0
    %408 = vmatpush1.bf16.msra.mxu0 %v345
    %409 = vmatprep.subr.bf16.mxu0 0
    %410 = vmatpush1.bf16.msra.mxu0 %v344
    %411 = vmatprep.subr.bf16.mxu0 0
    %412 = vmatpush1.bf16.msra.mxu0 %v343
    %413 = vmatprep.subr.bf16.mxu0 0
    %414 = vmatpush1.bf16.msra.mxu0 %v342
    %415 = vmatprep.subr.bf16.mxu0 0
    %416 = vmatpush1.bf16.msra.mxu0 %v341
    %417 = vmatprep.subr.bf16.mxu0 0
    %418 = vmatpush1.bf16.msra.mxu0 %v340
    %419 = vmatprep.subr.bf16.mxu0 0
    %420 = vmatpush2.bf16.msra.mxu0 0
    %421 = vmatprep.subr.bf16.mxu0 0
    %422 = vmatpush2.bf16.msra.mxu0 0
    %423 = vmatprep.subr.bf16.mxu0 0
    %424 = vmatpush2.bf16.msra.mxu0 0
    %425 = vmatprep.subr.bf16.mxu0 0
    %426 = vmatpush2.bf16.msra.mxu0 0
    %427 = vmatprep.subr.bf16.mxu0 0
    %428 = vmatpush2.bf16.msra.mxu0 0
    %429 = vmatprep.subr.bf16.mxu0 0
    %430 = vmatpush2.bf16.msra.mxu0 0
    %431 = vmatprep.subr.bf16.mxu0 0
    %432 = vmatpush2.bf16.msra.mxu0 0
    %433 = vmatprep.subr.bf16.mxu0 0
    %434 = vmatpush2.bf16.msra.mxu0 0
    %435 = vmatprep.mubr.bf16.mxu0 0
    %436 = vmatmul.mubr.bf16.gmra.mxu0 %v387
    %v437 = vpop.f32.mrf.mxu0
    %v438 = vadd.f32 %v353, %v437
    %v439 = vpop.f32.mrf.mxu0
    %v440 = vpop.f32.mrf.mxu0
    %v441 = vadd.f32 %v353, %v440
    %v442 = vpop.f32.mrf.mxu0
    %443 = vmatprep.mubr.bf16.mxu0 0
    %444 = vmatmul.mubr.bf16.gmra.mxu0 %v388
    %v445 = vpop.f32.mrf.mxu0
    %v446 = vadd.f32 %v353, %v445
    %v447 = vpop.f32.mrf.mxu0
    %v448 = vpop.f32.mrf.mxu0
    %v449 = vadd.f32 %v353, %v448
    %v450 = vpop.f32.mrf.mxu0
    %451 = vmatprep.mubr.bf16.mxu0 0
    %452 = vmatmul.mubr.bf16.gmra.mxu0 %v389
    %v453 = vpop.f32.mrf.mxu0
    %v454 = vadd.f32 %v353, %v453
    %v455 = vpop.f32.mrf.mxu0
    %v456 = vpop.f32.mrf.mxu0
    %v457 = vadd.f32 %v353, %v456
    %v458 = vpop.f32.mrf.mxu0
    %459 = vmatprep.mubr.bf16.mxu0 0
    %460 = vmatmul.mubr.bf16.gmra.mxu0 %v390
    %v461 = vpop.f32.mrf.mxu0
    %v462 = vadd.f32 %v353, %v461
    %v463 = vpop.f32.mrf.mxu0
    %v464 = vpop.f32.mrf.mxu0
    %v465 = vadd.f32 %v353, %v464
    %v466 = vpop.f32.mrf.mxu0
    %467 = vmatprep.mubr.bf16.mxu0 0
    %468 = vmatmul.mubr.bf16.gmra.mxu0 %v391
    %v469 = vpop.f32.mrf.mxu0
    %v470 = vadd.f32 %v353, %v469
    %v471 = vpop.f32.mrf.mxu0
    %v472 = vpop.f32.mrf.mxu0
    %v473 = vadd.f32 %v353, %v472
    %v474 = vpop.f32.mrf.mxu0
    %475 = vmatprep.mubr.bf16.mxu0 0
    %476 = vmatmul.mubr.bf16.gmra.mxu0 %v392
    %v477 = vpop.f32.mrf.mxu0
    %v478 = vadd.f32 %v353, %v477
    %v479 = vpop.f32.mrf.mxu0
    %v480 = vpop.f32.mrf.mxu0
    %v481 = vadd.f32 %v353, %v480
    %v482 = vpop.f32.mrf.mxu0
    %483 = vmatprep.mubr.bf16.mxu0 0
    %484 = vmatmul.mubr.bf16.gmra.mxu0 %v393
    %v485 = vpop.f32.mrf.mxu0
    %v486 = vadd.f32 %v353, %v485
    %v487 = vpop.f32.mrf.mxu0
    %v488 = vpop.f32.mrf.mxu0
    %v489 = vadd.f32 %v353, %v488
    %v490 = vpop.f32.mrf.mxu0
    %491 = vmatprep.mubr.bf16.mxu0 0
    %492 = vmatmul.mubr.bf16.gmra.mxu0 %v394
    %v493 = vpop.f32.mrf.mxu0
    %v494 = vadd.f32 %v353, %v493
    %v495 = vpop.f32.mrf.mxu0
    %v496 = vpop.f32.mrf.mxu0
    %v497 = vadd.f32 %v353, %v496
    %v498 = vpop.f32.mrf.mxu0
    %499 = vdwg.mxu0
    %v500 = vmax.f32 %v438, 0.0
    %v501 = vmax.f32 %v441, 0.0
    %v502 = vmax.f32 %v446, 0.0
    %v503 = vmax.f32 %v449, 0.0
    %v504 = vmax.f32 %v454, 0.0
    %v505 = vmax.f32 %v457, 0.0
    %v506 = vmax.f32 %v462, 0.0
    %v507 = vmax.f32 %v465, 0.0
    %v508 = vmax.f32 %v470, 0.0
    %v509 = vmax.f32 %v473, 0.0
    %v510 = vmax.f32 %v478, 0.0
    %v511 = vmax.f32 %v481, 0.0
    %v512 = vmax.f32 %v486, 0.0
    %v513 = vmax.f32 %v489, 0.0
    %v514 = vmax.f32 %v494, 0.0
    %v515 = vmax.f32 %v497, 0.0
    %v516 = vpack.c.bf16 %v501, %v500
    %v517 = vpack.c.bf16 %v503, %v502
    %v518 = vpack.c.bf16 %v505, %v504
    %v519 = vpack.c.bf16 %v507, %v506
    %v520 = vpack.c.bf16 %v509, %v508
    %v521 = vpack.c.bf16 %v511, %v510
    %v522 = vpack.c.bf16 %v513, %v512
    %v523 = vpack.c.bf16 %v515, %v514
    %v524 = vld [vmem:[#allocation8] sm:$0xf]
    %v525 = vld [vmem:[#allocation8 + $0x4] sm:$0xf]
    %v526 = vld [vmem:[#allocation8 + $0x8] sm:$0xf]
    %v527 = vld [vmem:[#allocation8 + $0xc] sm:$0xf]
    %v528 = vld [vmem:[#allocation8 + $0x10] sm:$0xf]
    %v529 = vld [vmem:[#allocation8 + $0x14] sm:$0xf]
    %v530 = vld [vmem:[#allocation8 + $0x18] sm:$0xf]
    %v531 = vld [vmem:[#allocation8 + $0x1c] sm:$0xf]
    %v532 = vld [vmem:[#allocation8 + $0x20] sm:$0xf]
    %v533 = vld [vmem:[#allocation8 + $0x24] sm:$0xf]
    %v534 = vld [vmem:[#allocation8 + $0x28] sm:$0xf]
    %v535 = vld [vmem:[#allocation8 + $0x2c] sm:$0xf]
    %v536 = vld [vmem:[#allocation8 + $0x30] sm:$0xf]
    %v537 = vld [vmem:[#allocation8 + $0x34] sm:$0xf]
    %v538 = vld [vmem:[#allocation8 + $0x38] sm:$0xf]
    %v539 = vld [vmem:[#allocation8 + $0x3c] sm:$0xf]
    %v556 = vunpack.c.l.b16 %v524
    %v557 = vunpack.c.l.b16 %v525
    %v558 = vunpack.c.l.b16 %v526
    %v559 = vunpack.c.l.b16 %v527
    %v560 = vunpack.c.l.b16 %v528
    %v561 = vunpack.c.l.b16 %v529
    %v562 = vunpack.c.l.b16 %v530
    %v563 = vunpack.c.l.b16 %v531
    %v564 = vunpack.c.l.b16 %v532
    %v565 = vunpack.c.l.b16 %v533
    %v566 = vunpack.c.l.b16 %v534
    %v567 = vunpack.c.l.b16 %v535
    %v568 = vunpack.c.l.b16 %v536
    %v569 = vunpack.c.l.b16 %v537
    %v570 = vunpack.c.l.b16 %v538
    %v571 = vunpack.c.l.b16 %v539
    %v572 = vpack.c.b16 %v557, %v556
    %v573 = vpack.c.b16 %v559, %v558
    %v574 = vpack.c.b16 %v561, %v560
    %v575 = vpack.c.b16 %v563, %v562
    %v576 = vpack.c.b16 %v565, %v564
    %v577 = vpack.c.b16 %v567, %v566
    %v578 = vpack.c.b16 %v569, %v568
    %v579 = vpack.c.b16 %v571, %v570
    %588 = vmatprep.subr.bf16.mxu0 0
    %589 = vmatpush1.bf16.msra.mxu0 %v579
    %590 = vmatprep.subr.bf16.mxu0 0
    %591 = vmatpush1.bf16.msra.mxu0 %v578
    %592 = vmatprep.subr.bf16.mxu0 0
    %593 = vmatpush1.bf16.msra.mxu0 %v577
    %594 = vmatprep.subr.bf16.mxu0 0
    %595 = vmatpush1.bf16.msra.mxu0 %v576
    %596 = vmatprep.subr.bf16.mxu0 0
    %597 = vmatpush1.bf16.msra.mxu0 %v575
    %598 = vmatprep.subr.bf16.mxu0 0
    %599 = vmatpush1.bf16.msra.mxu0 %v574
    %600 = vmatprep.subr.bf16.mxu0 0
    %601 = vmatpush1.bf16.msra.mxu0 %v573
    %602 = vmatprep.subr.bf16.mxu0 0
    %603 = vmatpush1.bf16.msra.mxu0 %v572
    %604 = vmatprep.subr.bf16.mxu0 0
    %605 = vmatpush2.bf16.msra.mxu0 0
    %606 = vmatprep.subr.bf16.mxu0 0
    %607 = vmatpush2.bf16.msra.mxu0 0
    %608 = vmatprep.subr.bf16.mxu0 0
    %609 = vmatpush2.bf16.msra.mxu0 0
    %610 = vmatprep.subr.bf16.mxu0 0
    %611 = vmatpush2.bf16.msra.mxu0 0
    %612 = vmatprep.subr.bf16.mxu0 0
    %613 = vmatpush2.bf16.msra.mxu0 0
    %614 = vmatprep.subr.bf16.mxu0 0
    %615 = vmatpush2.bf16.msra.mxu0 0
    %616 = vmatprep.subr.bf16.mxu0 0
    %617 = vmatpush2.bf16.msra.mxu0 0
    %618 = vmatprep.subr.bf16.mxu0 0
    %619 = vmatpush2.bf16.msra.mxu0 0
    %620 = vmatprep.mubr.bf16.mxu0 0
    %621 = vmatmul.mubr.bf16.gmra.mxu0 %v516
    %v622 = vpop.f32.mrf.mxu0
    %v623 = vadd.f32 0.0, %v622
    %v624 = vpop.f32.mrf.mxu0
    %v625 = vpop.f32.mrf.mxu0
    %v626 = vadd.f32 0.0, %v625
    %v627 = vpop.f32.mrf.mxu0
    %628 = vmatprep.mubr.bf16.mxu0 0
    %629 = vmatmul.mubr.bf16.gmra.mxu0 %v517
    %v630 = vpop.f32.mrf.mxu0
    %v631 = vadd.f32 0.0, %v630
    %v632 = vpop.f32.mrf.mxu0
    %v633 = vpop.f32.mrf.mxu0
    %v634 = vadd.f32 0.0, %v633
    %v635 = vpop.f32.mrf.mxu0
    %636 = vmatprep.mubr.bf16.mxu0 0
    %637 = vmatmul.mubr.bf16.gmra.mxu0 %v518
    %v638 = vpop.f32.mrf.mxu0
    %v639 = vadd.f32 0.0, %v638
    %v640 = vpop.f32.mrf.mxu0
    %v641 = vpop.f32.mrf.mxu0
    %v642 = vadd.f32 0.0, %v641
    %v643 = vpop.f32.mrf.mxu0
    %644 = vmatprep.mubr.bf16.mxu0 0
    %645 = vmatmul.mubr.bf16.gmra.mxu0 %v519
    %v646 = vpop.f32.mrf.mxu0
    %v647 = vadd.f32 0.0, %v646
    %v648 = vpop.f32.mrf.mxu0
    %v649 = vpop.f32.mrf.mxu0
    %v650 = vadd.f32 0.0, %v649
    %v651 = vpop.f32.mrf.mxu0
    %652 = vmatprep.mubr.bf16.mxu0 0
    %653 = vmatmul.mubr.bf16.gmra.mxu0 %v520
    %v654 = vpop.f32.mrf.mxu0
    %v655 = vadd.f32 0.0, %v654
    %v656 = vpop.f32.mrf.mxu0
    %v657 = vpop.f32.mrf.mxu0
    %v658 = vadd.f32 0.0, %v657
    %v659 = vpop.f32.mrf.mxu0
    %660 = vmatprep.mubr.bf16.mxu0 0
    %661 = vmatmul.mubr.bf16.gmra.mxu0 %v521
    %v662 = vpop.f32.mrf.mxu0
    %v663 = vadd.f32 0.0, %v662
    %v664 = vpop.f32.mrf.mxu0
    %v665 = vpop.f32.mrf.mxu0
    %v666 = vadd.f32 0.0, %v665
    %v667 = vpop.f32.mrf.mxu0
    %668 = vmatprep.mubr.bf16.mxu0 0
    %669 = vmatmul.mubr.bf16.gmra.mxu0 %v522
    %v670 = vpop.f32.mrf.mxu0
    %v671 = vadd.f32 0.0, %v670
    %v672 = vpop.f32.mrf.mxu0
    %v673 = vpop.f32.mrf.mxu0
    %v674 = vadd.f32 0.0, %v673
    %v675 = vpop.f32.mrf.mxu0
    %676 = vmatprep.mubr.bf16.mxu0 0
    %677 = vmatmul.mubr.bf16.gmra.mxu0 %v523
    %v678 = vpop.f32.mrf.mxu0
    %v679 = vadd.f32 0.0, %v678
    %v680 = vpop.f32.mrf.mxu0
    %v681 = vpop.f32.mrf.mxu0
    %v682 = vadd.f32 0.0, %v681
    %v683 = vpop.f32.mrf.mxu0
    %684 = vdwg.mxu0
    %v685 = vpack.c.bf16 %v626, %v623
    %v686 = vpack.c.bf16 %v634, %v631
    %v687 = vpack.c.bf16 %v642, %v639
    %v688 = vpack.c.bf16 %v650, %v647
    %v689 = vpack.c.bf16 %v658, %v655
    %v690 = vpack.c.bf16 %v666, %v663
    %v691 = vpack.c.bf16 %v674, %v671
    %v692 = vpack.c.bf16 %v682, %v679
    %v693 = vld [vmem:[%s5] sm:$0x1]
    %v695 = vlaneseq
    %v696 = vshrl.u32 %v695, 7
    %v697 = vsub.s32 0, %v696
    %v698 = vrot.slane %v693, %v697
    %700 = vmatprep.subr.bf16.mxu0 0
    %701 = vmatpush1.bf16.msra.mxu0 %v692
    %702 = vmatprep.subr.bf16.mxu0 0
    %703 = vmatpush1.bf16.msra.mxu0 %v691
    %704 = vmatprep.subr.bf16.mxu0 0
    %705 = vmatpush1.bf16.msra.mxu0 %v690
    %706 = vmatprep.subr.bf16.mxu0 0
    %707 = vmatpush1.bf16.msra.mxu0 %v689
    %708 = vmatprep.subr.bf16.mxu0 0
    %709 = vmatpush1.bf16.msra.mxu0 %v688
    %710 = vmatprep.subr.bf16.mxu0 0
    %711 = vmatpush1.bf16.msra.mxu0 %v687
    %712 = vmatprep.subr.bf16.mxu0 0
    %713 = vmatpush1.bf16.msra.mxu0 %v686
    %714 = vmatprep.subr.bf16.mxu0 0
    %715 = vmatpush1.bf16.msra.mxu0 %v685
    %716 = vmatprep.subr.bf16.mxu0 0
    %717 = vmatpush2.bf16.msra.mxu0 0
    %718 = vmatprep.subr.bf16.mxu0 0
    %719 = vmatpush2.bf16.msra.mxu0 0
    %720 = vmatprep.subr.bf16.mxu0 0
    %721 = vmatpush2.bf16.msra.mxu0 0
    %722 = vmatprep.subr.bf16.mxu0 0
    %723 = vmatpush2.bf16.msra.mxu0 0
    %724 = vmatprep.subr.bf16.mxu0 0
    %725 = vmatpush2.bf16.msra.mxu0 0
    %726 = vmatprep.subr.bf16.mxu0 0
    %727 = vmatpush2.bf16.msra.mxu0 0
    %728 = vmatprep.subr.bf16.mxu0 0
    %729 = vmatpush2.bf16.msra.mxu0 0
    %730 = vmatprep.subr.bf16.mxu0 0
    %731 = vmatpush2.bf16.msra.mxu0 0
    %732 = vmatprep.mubr.bf16.mxu0 0
    %733 = vmatmul.mubr.bf16.gmra.mxu0 %v387
    %v734 = vpop.f32.mrf.mxu0
    %v735 = vadd.f32 %v698, %v734
    %v736 = vpop.f32.mrf.mxu0
    %v737 = vpop.f32.mrf.mxu0
    %v738 = vadd.f32 %v698, %v737
    %v739 = vpop.f32.mrf.mxu0
    %740 = vmatprep.mubr.bf16.mxu0 0
    %741 = vmatmul.mubr.bf16.gmra.mxu0 %v388
    %v742 = vpop.f32.mrf.mxu0
    %v743 = vadd.f32 %v698, %v742
    %v744 = vpop.f32.mrf.mxu0
    %v745 = vpop.f32.mrf.mxu0
    %v746 = vadd.f32 %v698, %v745
    %v747 = vpop.f32.mrf.mxu0
    %748 = vmatprep.mubr.bf16.mxu0 0
    %749 = vmatmul.mubr.bf16.gmra.mxu0 %v389
    %v750 = vpop.f32.mrf.mxu0
    %v751 = vadd.f32 %v698, %v750
    %v752 = vpop.f32.mrf.mxu0
    %v753 = vpop.f32.mrf.mxu0
    %v754 = vadd.f32 %v698, %v753
    %v755 = vpop.f32.mrf.mxu0
    %756 = vmatprep.mubr.bf16.mxu0 0
    %757 = vmatmul.mubr.bf16.gmra.mxu0 %v390
    %v758 = vpop.f32.mrf.mxu0
    %v759 = vadd.f32 %v698, %v758
    %v760 = vpop.f32.mrf.mxu0
    %v761 = vpop.f32.mrf.mxu0
    %v762 = vadd.f32 %v698, %v761
    %v763 = vpop.f32.mrf.mxu0
    %764 = vmatprep.mubr.bf16.mxu0 0
    %765 = vmatmul.mubr.bf16.gmra.mxu0 %v391
    %v766 = vpop.f32.mrf.mxu0
    %v767 = vadd.f32 %v698, %v766
    %v768 = vpop.f32.mrf.mxu0
    %v769 = vpop.f32.mrf.mxu0
    %v770 = vadd.f32 %v698, %v769
    %v771 = vpop.f32.mrf.mxu0
    %772 = vmatprep.mubr.bf16.mxu0 0
    %773 = vmatmul.mubr.bf16.gmra.mxu0 %v392
    %v774 = vpop.f32.mrf.mxu0
    %v775 = vadd.f32 %v698, %v774
    %v776 = vpop.f32.mrf.mxu0
    %v777 = vpop.f32.mrf.mxu0
    %v778 = vadd.f32 %v698, %v777
    %v779 = vpop.f32.mrf.mxu0
    %780 = vmatprep.mubr.bf16.mxu0 0
    %781 = vmatmul.mubr.bf16.gmra.mxu0 %v393
    %v782 = vpop.f32.mrf.mxu0
    %v783 = vadd.f32 %v698, %v782
    %v784 = vpop.f32.mrf.mxu0
    %v785 = vpop.f32.mrf.mxu0
    %v786 = vadd.f32 %v698, %v785
    %v787 = vpop.f32.mrf.mxu0
    %788 = vmatprep.mubr.bf16.mxu0 0
    %789 = vmatmul.mubr.bf16.gmra.mxu0 %v394
    %v790 = vpop.f32.mrf.mxu0
    %v791 = vadd.f32 %v698, %v790
    %v792 = vpop.f32.mrf.mxu0
    %v793 = vpop.f32.mrf.mxu0
    %v794 = vadd.f32 %v698, %v793
    %v795 = vpop.f32.mrf.mxu0
    %796 = vdwg.mxu0
    %v797 = vmax.f32 %v735, 0.0
    %v798 = vmax.f32 %v738, 0.0
    %v799 = vmax.f32 %v743, 0.0
    %v800 = vmax.f32 %v746, 0.0
    %v801 = vmax.f32 %v751, 0.0
    %v802 = vmax.f32 %v754, 0.0
    %v803 = vmax.f32 %v759, 0.0
    %v804 = vmax.f32 %v762, 0.0
    %v805 = vmax.f32 %v767, 0.0
    %v806 = vmax.f32 %v770, 0.0
    %v807 = vmax.f32 %v775, 0.0
    %v808 = vmax.f32 %v778, 0.0
    %v809 = vmax.f32 %v783, 0.0
    %v810 = vmax.f32 %v786, 0.0
    %v811 = vmax.f32 %v791, 0.0
    %v812 = vmax.f32 %v794, 0.0
    %v813 = vpack.c.bf16 %v798, %v797
    %v814 = vpack.c.bf16 %v800, %v799
    %v815 = vpack.c.bf16 %v802, %v801
    %v816 = vpack.c.bf16 %v804, %v803
    %v817 = vpack.c.bf16 %v806, %v805
    %v818 = vpack.c.bf16 %v808, %v807
    %v819 = vpack.c.bf16 %v810, %v809
    %v820 = vpack.c.bf16 %v812, %v811
    %v821 = vld [vmem:[#allocation10] sm:$0xf]
    %v822 = vld [vmem:[#allocation10 + $0x4] sm:$0xf]
    %v823 = vld [vmem:[#allocation10 + $0x8] sm:$0xf]
    %v824 = vld [vmem:[#allocation10 + $0xc] sm:$0xf]
    %v825 = vld [vmem:[#allocation10 + $0x10] sm:$0xf]
    %v826 = vld [vmem:[#allocation10 + $0x14] sm:$0xf]
    %v827 = vld [vmem:[#allocation10 + $0x18] sm:$0xf]
    %v828 = vld [vmem:[#allocation10 + $0x1c] sm:$0xf]
    %v829 = vld [vmem:[#allocation10 + $0x20] sm:$0xf]
    %v830 = vld [vmem:[#allocation10 + $0x24] sm:$0xf]
    %v831 = vld [vmem:[#allocation10 + $0x28] sm:$0xf]
    %v832 = vld [vmem:[#allocation10 + $0x2c] sm:$0xf]
    %v833 = vld [vmem:[#allocation10 + $0x30] sm:$0xf]
    %v834 = vld [vmem:[#allocation10 + $0x34] sm:$0xf]
    %v835 = vld [vmem:[#allocation10 + $0x38] sm:$0xf]
    %v836 = vld [vmem:[#allocation10 + $0x3c] sm:$0xf]
    %v853 = vunpack.c.l.b16 %v821
    %v854 = vunpack.c.l.b16 %v822
    %v855 = vunpack.c.l.b16 %v823
    %v856 = vunpack.c.l.b16 %v824
    %v857 = vunpack.c.l.b16 %v825
    %v858 = vunpack.c.l.b16 %v826
    %v859 = vunpack.c.l.b16 %v827
    %v860 = vunpack.c.l.b16 %v828
    %v861 = vunpack.c.l.b16 %v829
    %v862 = vunpack.c.l.b16 %v830
    %v863 = vunpack.c.l.b16 %v831
    %v864 = vunpack.c.l.b16 %v832
    %v865 = vunpack.c.l.b16 %v833
    %v866 = vunpack.c.l.b16 %v834
    %v867 = vunpack.c.l.b16 %v835
    %v868 = vunpack.c.l.b16 %v836
    %v869 = vpack.c.b16 %v854, %v853
    %v870 = vpack.c.b16 %v856, %v855
    %v871 = vpack.c.b16 %v858, %v857
    %v872 = vpack.c.b16 %v860, %v859
    %v873 = vpack.c.b16 %v862, %v861
    %v874 = vpack.c.b16 %v864, %v863
    %v875 = vpack.c.b16 %v866, %v865
    %v876 = vpack.c.b16 %v868, %v867
    %885 = vmatprep.subr.bf16.mxu0 0
    %886 = vmatpush1.bf16.msra.mxu0 %v876
    %887 = vmatprep.subr.bf16.mxu0 0
    %888 = vmatpush1.bf16.msra.mxu0 %v875
    %889 = vmatprep.subr.bf16.mxu0 0
    %890 = vmatpush1.bf16.msra.mxu0 %v874
    %891 = vmatprep.subr.bf16.mxu0 0
    %892 = vmatpush1.bf16.msra.mxu0 %v873
    %893 = vmatprep.subr.bf16.mxu0 0
    %894 = vmatpush1.bf16.msra.mxu0 %v872
    %895 = vmatprep.subr.bf16.mxu0 0
    %896 = vmatpush1.bf16.msra.mxu0 %v871
    %897 = vmatprep.subr.bf16.mxu0 0
    %898 = vmatpush1.bf16.msra.mxu0 %v870
    %899 = vmatprep.subr.bf16.mxu0 0
    %900 = vmatpush1.bf16.msra.mxu0 %v869
    %901 = vmatprep.subr.bf16.mxu0 0
    %902 = vmatpush2.bf16.msra.mxu0 0
    %903 = vmatprep.subr.bf16.mxu0 0
    %904 = vmatpush2.bf16.msra.mxu0 0
    %905 = vmatprep.subr.bf16.mxu0 0
    %906 = vmatpush2.bf16.msra.mxu0 0
    %907 = vmatprep.subr.bf16.mxu0 0
    %908 = vmatpush2.bf16.msra.mxu0 0
    %909 = vmatprep.subr.bf16.mxu0 0
    %910 = vmatpush2.bf16.msra.mxu0 0
    %911 = vmatprep.subr.bf16.mxu0 0
    %912 = vmatpush2.bf16.msra.mxu0 0
    %913 = vmatprep.subr.bf16.mxu0 0
    %914 = vmatpush2.bf16.msra.mxu0 0
    %915 = vmatprep.subr.bf16.mxu0 0
    %916 = vmatpush2.bf16.msra.mxu0 0
    %917 = vmatprep.mubr.bf16.mxu0 0
    %918 = vmatmul.mubr.bf16.gmra.mxu0 %v813
    %v919 = vpop.f32.mrf.mxu0
    %v920 = vadd.f32 0.0, %v919
    %v921 = vpop.f32.mrf.mxu0
    %v922 = vpop.f32.mrf.mxu0
    %v923 = vadd.f32 0.0, %v922
    %v924 = vpop.f32.mrf.mxu0
    %925 = vmatprep.mubr.bf16.mxu0 0
    %926 = vmatmul.mubr.bf16.gmra.mxu0 %v814
    %v927 = vpop.f32.mrf.mxu0
    %v928 = vadd.f32 0.0, %v927
    %v929 = vpop.f32.mrf.mxu0
    %v930 = vpop.f32.mrf.mxu0
    %v931 = vadd.f32 0.0, %v930
    %v932 = vpop.f32.mrf.mxu0
    %933 = vmatprep.mubr.bf16.mxu0 0
    %934 = vmatmul.mubr.bf16.gmra.mxu0 %v815
    %v935 = vpop.f32.mrf.mxu0
    %v936 = vadd.f32 0.0, %v935
    %v937 = vpop.f32.mrf.mxu0
    %v938 = vpop.f32.mrf.mxu0
    %v939 = vadd.f32 0.0, %v938
    %v940 = vpop.f32.mrf.mxu0
    %941 = vmatprep.mubr.bf16.mxu0 0
    %942 = vmatmul.mubr.bf16.gmra.mxu0 %v816
    %v943 = vpop.f32.mrf.mxu0
    %v944 = vadd.f32 0.0, %v943
    %v945 = vpop.f32.mrf.mxu0
    %v946 = vpop.f32.mrf.mxu0
    %v947 = vadd.f32 0.0, %v946
    %v948 = vpop.f32.mrf.mxu0
    %949 = vmatprep.mubr.bf16.mxu0 0
    %950 = vmatmul.mubr.bf16.gmra.mxu0 %v817
    %v951 = vpop.f32.mrf.mxu0
    %v952 = vadd.f32 0.0, %v951
    %v953 = vpop.f32.mrf.mxu0
    %v954 = vpop.f32.mrf.mxu0
    %v955 = vadd.f32 0.0, %v954
    %v956 = vpop.f32.mrf.mxu0
    %957 = vmatprep.mubr.bf16.mxu0 0
    %958 = vmatmul.mubr.bf16.gmra.mxu0 %v818
    %v959 = vpop.f32.mrf.mxu0
    %v960 = vadd.f32 0.0, %v959
    %v961 = vpop.f32.mrf.mxu0
    %v962 = vpop.f32.mrf.mxu0
    %v963 = vadd.f32 0.0, %v962
    %v964 = vpop.f32.mrf.mxu0
    %965 = vmatprep.mubr.bf16.mxu0 0
    %966 = vmatmul.mubr.bf16.gmra.mxu0 %v819
    %v967 = vpop.f32.mrf.mxu0
    %v968 = vadd.f32 0.0, %v967
    %v969 = vpop.f32.mrf.mxu0
    %v970 = vpop.f32.mrf.mxu0
    %v971 = vadd.f32 0.0, %v970
    %v972 = vpop.f32.mrf.mxu0
    %973 = vmatprep.mubr.bf16.mxu0 0
    %974 = vmatmul.mubr.bf16.gmra.mxu0 %v820
    %v975 = vpop.f32.mrf.mxu0
    %v976 = vadd.f32 0.0, %v975
    %v977 = vpop.f32.mrf.mxu0
    %v978 = vpop.f32.mrf.mxu0
    %v979 = vadd.f32 0.0, %v978
    %v980 = vpop.f32.mrf.mxu0
    %981 = vdwg.mxu0
    %v982 = vpack.c.bf16 %v923, %v920
    %v983 = vpack.c.bf16 %v931, %v928
    %v984 = vpack.c.bf16 %v939, %v936
    %v985 = vpack.c.bf16 %v947, %v944
    %v986 = vpack.c.bf16 %v955, %v952
    %v987 = vpack.c.bf16 %v963, %v960
    %v988 = vpack.c.bf16 %v971, %v968
    %v989 = vpack.c.bf16 %v979, %v976
    %v990 = vld [vmem:[%s7] sm:$0x1]
    %v992 = vlaneseq
    %v993 = vshrl.u32 %v992, 7
    %v994 = vsub.s32 0, %v993
    %v995 = vrot.slane %v990, %v994
    %997 = vmatprep.subr.bf16.mxu0 0
    %998 = vmatpush1.bf16.msra.mxu0 %v989
    %999 = vmatprep.subr.bf16.mxu0 0
    %1000 = vmatpush1.bf16.msra.mxu0 %v988
    %1001 = vmatprep.subr.bf16.mxu0 0
    %1002 = vmatpush1.bf16.msra.mxu0 %v987
    %1003 = vmatprep.subr.bf16.mxu0 0
    %1004 = vmatpush1.bf16.msra.mxu0 %v986
    %1005 = vmatprep.subr.bf16.mxu0 0
    %1006 = vmatpush1.bf16.msra.mxu0 %v985
    %1007 = vmatprep.subr.bf16.mxu0 0
    %1008 = vmatpush1.bf16.msra.mxu0 %v984
    %1009 = vmatprep.subr.bf16.mxu0 0
    %1010 = vmatpush1.bf16.msra.mxu0 %v983
    %1011 = vmatprep.subr.bf16.mxu0 0
    %1012 = vmatpush1.bf16.msra.mxu0 %v982
    %1013 = vmatprep.subr.bf16.mxu0 0
    %1014 = vmatpush2.bf16.msra.mxu0 0
    %1015 = vmatprep.subr.bf16.mxu0 0
    %1016 = vmatpush2.bf16.msra.mxu0 0
    %1017 = vmatprep.subr.bf16.mxu0 0
    %1018 = vmatpush2.bf16.msra.mxu0 0
    %1019 = vmatprep.subr.bf16.mxu0 0
    %1020 = vmatpush2.bf16.msra.mxu0 0
    %1021 = vmatprep.subr.bf16.mxu0 0
    %1022 = vmatpush2.bf16.msra.mxu0 0
    %1023 = vmatprep.subr.bf16.mxu0 0
    %1024 = vmatpush2.bf16.msra.mxu0 0
    %1025 = vmatprep.subr.bf16.mxu0 0
    %1026 = vmatpush2.bf16.msra.mxu0 0
    %1027 = vmatprep.subr.bf16.mxu0 0
    %1028 = vmatpush2.bf16.msra.mxu0 0
    %1029 = vmatprep.mubr.bf16.mxu0 0
    %1030 = vmatmul.mubr.bf16.gmra.mxu0 %v387
    %v1031 = vpop.f32.mrf.mxu0
    %v1032 = vadd.f32 %v995, %v1031
    %v1033 = vpop.f32.mrf.mxu0
    %v1034 = vpop.f32.mrf.mxu0
    %v1035 = vadd.f32 %v995, %v1034
    %v1036 = vpop.f32.mrf.mxu0
    %1037 = vmatprep.mubr.bf16.mxu0 0
    %1038 = vmatmul.mubr.bf16.gmra.mxu0 %v388
    %v1039 = vpop.f32.mrf.mxu0
    %v1040 = vadd.f32 %v995, %v1039
    %v1041 = vpop.f32.mrf.mxu0
    %v1042 = vpop.f32.mrf.mxu0
    %v1043 = vadd.f32 %v995, %v1042
    %v1044 = vpop.f32.mrf.mxu0
    %1045 = vmatprep.mubr.bf16.mxu0 0
    %1046 = vmatmul.mubr.bf16.gmra.mxu0 %v389
    %v1047 = vpop.f32.mrf.mxu0
    %v1048 = vadd.f32 %v995, %v1047
    %v1049 = vpop.f32.mrf.mxu0
    %v1050 = vpop.f32.mrf.mxu0
    %v1051 = vadd.f32 %v995, %v1050
    %v1052 = vpop.f32.mrf.mxu0
    %1053 = vmatprep.mubr.bf16.mxu0 0
    %1054 = vmatmul.mubr.bf16.gmra.mxu0 %v390
    %v1055 = vpop.f32.mrf.mxu0
    %v1056 = vadd.f32 %v995, %v1055
    %v1057 = vpop.f32.mrf.mxu0
    %v1058 = vpop.f32.mrf.mxu0
    %v1059 = vadd.f32 %v995, %v1058
    %v1060 = vpop.f32.mrf.mxu0
    %1061 = vmatprep.mubr.bf16.mxu0 0
    %1062 = vmatmul.mubr.bf16.gmra.mxu0 %v391
    %v1063 = vpop.f32.mrf.mxu0
    %v1064 = vadd.f32 %v995, %v1063
    %v1065 = vpop.f32.mrf.mxu0
    %v1066 = vpop.f32.mrf.mxu0
    %v1067 = vadd.f32 %v995, %v1066
    %v1068 = vpop.f32.mrf.mxu0
    %1069 = vmatprep.mubr.bf16.mxu0 0
    %1070 = vmatmul.mubr.bf16.gmra.mxu0 %v392
    %v1071 = vpop.f32.mrf.mxu0
    %v1072 = vadd.f32 %v995, %v1071
    %v1073 = vpop.f32.mrf.mxu0
    %v1074 = vpop.f32.mrf.mxu0
    %v1075 = vadd.f32 %v995, %v1074
    %v1076 = vpop.f32.mrf.mxu0
    %1077 = vmatprep.mubr.bf16.mxu0 0
    %1078 = vmatmul.mubr.bf16.gmra.mxu0 %v393
    %v1079 = vpop.f32.mrf.mxu0
    %v1080 = vadd.f32 %v995, %v1079
    %v1081 = vpop.f32.mrf.mxu0
    %v1082 = vpop.f32.mrf.mxu0
    %v1083 = vadd.f32 %v995, %v1082
    %v1084 = vpop.f32.mrf.mxu0
    %1085 = vmatprep.mubr.bf16.mxu0 0
    %1086 = vmatmul.mubr.bf16.gmra.mxu0 %v394
    %v1087 = vpop.f32.mrf.mxu0
    %v1088 = vadd.f32 %v995, %v1087
    %v1089 = vpop.f32.mrf.mxu0
    %v1090 = vpop.f32.mrf.mxu0
    %v1091 = vadd.f32 %v995, %v1090
    %v1092 = vpop.f32.mrf.mxu0
    %1093 = vdwg.mxu0
    %v1094 = vpack.c.bf16 %v1035, %v1032
    %v1095 = vpack.c.bf16 %v1043, %v1040
    %v1096 = vpack.c.bf16 %v1051, %v1048
    %v1097 = vpack.c.bf16 %v1059, %v1056
    %v1098 = vpack.c.bf16 %v1067, %v1064
    %v1099 = vpack.c.bf16 %v1075, %v1072
    %v1100 = vpack.c.bf16 %v1083, %v1080
    %v1101 = vpack.c.bf16 %v1091, %v1088
    %v1110 = vunpack.c.l.b16 %v1094
    %v1111 = vunpack.c.h.b16 %v1094
    %v1112 = vunpack.c.l.b16 %v1095
    %v1113 = vunpack.c.h.b16 %v1095
    %v1114 = vunpack.c.l.b16 %v1096
    %v1115 = vunpack.c.h.b16 %v1096
    %v1116 = vunpack.c.l.b16 %v1097
    %v1117 = vunpack.c.h.b16 %v1097
    %v1118 = vunpack.c.l.b16 %v1098
    %v1119 = vunpack.c.h.b16 %v1098
    %v1120 = vunpack.c.l.b16 %v1099
    %v1121 = vunpack.c.h.b16 %v1099
    %v1122 = vunpack.c.l.b16 %v1100
    %v1123 = vunpack.c.h.b16 %v1100
    %v1124 = vunpack.c.l.b16 %v1101
    %v1125 = vunpack.c.h.b16 %v1101
    %v1126 = vpack.c.b16 %v1110, %v1110
    %v1127 = vpack.c.b16 %v1111, %v1111
    %v1128 = vpack.c.b16 %v1112, %v1112
    %v1129 = vpack.c.b16 %v1113, %v1113
    %v1130 = vpack.c.b16 %v1114, %v1114
    %v1131 = vpack.c.b16 %v1115, %v1115
    %v1132 = vpack.c.b16 %v1116, %v1116
    %v1133 = vpack.c.b16 %v1117, %v1117
    %v1134 = vpack.c.b16 %v1118, %v1118
    %v1135 = vpack.c.b16 %v1119, %v1119
    %v1136 = vpack.c.b16 %v1120, %v1120
    %v1137 = vpack.c.b16 %v1121, %v1121
    %v1138 = vpack.c.b16 %v1122, %v1122
    %v1139 = vpack.c.b16 %v1123, %v1123
    %v1140 = vpack.c.b16 %v1124, %v1124
    %v1141 = vpack.c.b16 %v1125, %v1125
    %1158 = vst [vmem:[#allocation11] sm:$0xf] %v1126
    %1159 = vst [vmem:[#allocation11 + $0x4] sm:$0xf] %v1127
    %1160 = vst [vmem:[#allocation11 + $0x8] sm:$0xf] %v1128
    %1161 = vst [vmem:[#allocation11 + $0xc] sm:$0xf] %v1129
    %1162 = vst [vmem:[#allocation11 + $0x10] sm:$0xf] %v1130
    %1163 = vst [vmem:[#allocation11 + $0x14] sm:$0xf] %v1131
    %1164 = vst [vmem:[#allocation11 + $0x18] sm:$0xf] %v1132
    %1165 = vst [vmem:[#allocation11 + $0x1c] sm:$0xf] %v1133
    %1166 = vst [vmem:[#allocation11 + $0x20] sm:$0xf] %v1134
    %1167 = vst [vmem:[#allocation11 + $0x24] sm:$0xf] %v1135
    %1168 = vst [vmem:[#allocation11 + $0x28] sm:$0xf] %v1136
    %1169 = vst [vmem:[#allocation11 + $0x2c] sm:$0xf] %v1137
    %1170 = vst [vmem:[#allocation11 + $0x30] sm:$0xf] %v1138
    %1171 = vst [vmem:[#allocation11 + $0x34] sm:$0xf] %v1139
    %1172 = vst [vmem:[#allocation11 + $0x38] sm:$0xf] %v1140
    %1173 = vst [vmem:[#allocation11 + $0x3c] sm:$0xf] %v1141
    // Predicated region
    $region54: #{tpu_custom_call.1} parent=1 // pred_check
      _
    $region55: #{tpu_custom_call.1} parent=1 // pred_check_branch
      %1175 = sbr.rel (0) target = $region57
    $region56: #{tpu_custom_call.1} parent=1 // pred_region
      %s1177 = ssub.s32 1024, 1024
      %1178 = vsyncadd [#allocation4], %s1177
      %s1179 = sshll.u32 [#allocation11], 4
      %s1180 = int_to_ptr.vmem [resolvable:$true] %s1179
      %1185 = dma.vmem_to_hbm [thread:$0]  %s1180, 1024, %s8, [#allocation4], 64, 64, 4
    $region57: #{tpu_custom_call.1} parent=1 // pred_fallthru
      _
    // Predicated region
    $region58: #{tpu_custom_call.1} parent=1 // pred_check
      _
    $region59: #{tpu_custom_call.1} parent=1 // pred_check_branch
      %1187 = sbr.rel (0) target = $region61
    $region60: #{tpu_custom_call.1} parent=1 // pred_region
      %1188 = dma.done [#allocation4], 1024
    $region61: #{tpu_custom_call.1} parent=1 // pred_fallthru
      _
    %1189 = vsyncpa [#allocation3], 1
    %1190 = vsyncpa [#allocation6], 1
    %1191 = vsyncpa [#allocation9], 1
    %1192 = vsyncpa [#allocation4], 1

</llo_original>
